<compile_context>
chip_gen: v5e
topology: v5e:2x2
jax: 0.10.0
libtpu: 0.0.40
codegen_flags: <defaults>
</compile_context>

<pallas_src>
import jax
import jax.numpy as jnp
from jax.experimental import pallas as pl
from jax.experimental.pallas import tpu as pltpu


def mlp_kernel(x_ref, w1_ref, b1_ref, w2_ref, b2_ref, o_ref):
    # One batch tile per grid step: two tiny matmuls + bias + ReLU, all fused in-kernel.
    x = x_ref[...]                                      # (TB, D_in)  bf16 stream
    h = jnp.dot(x, w1_ref[...],
                preferred_element_type=jnp.float32)     # (TB, 10)    f32 accum
    h = jnp.maximum(h + b1_ref[...], 0.0)               # bias + ReLU in f32 (VPU)
    h = h.astype(w2_ref.dtype)                          # feed MXU in stream dtype
    y = jnp.dot(h, w2_ref[...],
                preferred_element_type=jnp.float32)     # (TB, 5)     f32 accum
    o_ref[...] = (y + b2_ref[...]).astype(o_ref.dtype)


def _round_up(n, m):
    return ((n + m - 1) // m) * m


def _vmem_capacity_bytes():
    try:
        return int(pltpu.get_tpu_info().vmem_capacity_bytes)
    except Exception:
        return 64 * 1024 * 1024  # conservative fallback (v7x per-TC VMEM)


def _pick_tile(batch, x_itemsize, out_itemsize, block_batch=None):
    # VMEM cost per batch-row of a tile: input + output tiles, each lane-padded to
    # 128 lanes and double-buffered by the pipeline.
    per_row = 2 * 128 * (x_itemsize + out_itemsize)
    vmem_cap = _vmem_capacity_bytes()
    # Keep tiles within ~5/8 of physical VMEM (headroom for weights + compiler scratch),
    # and never request more than 96 MiB of scoped VMEM.
    budget = min(vmem_cap * 5 // 8, 96 * 1024 * 1024)
    tb = (budget // per_row) // 8 * 8
    if block_batch is not None:
        tb = min(tb, _round_up(block_batch, 8))
    tb = min(tb, _round_up(batch, 8))
    # Guarantee >=2 grid steps when possible so ("parallel",) spans both v7x TCs.
    if batch >= 16 and pl.cdiv(batch, tb) < 2:
        tb = _round_up(pl.cdiv(batch, 2), 8)
    tb = max(tb, 8)
    vmem_limit = max(per_row * tb + 2 * 1024 * 1024, 16 * 1024 * 1024)
    vmem_limit = min(vmem_limit, budget + 2 * 1024 * 1024)
    return tb, int(vmem_limit)


def toy_model_forward(x, w1, b1, w2, b2, *, block_batch=None,
                      stream_dtype=jnp.bfloat16):
    """Fused Linear(d_in->hidden) -> ReLU -> Linear(hidden->out).

    x: (B, d_in); w1: (d_in, hidden); b1: (1, hidden); w2: (hidden, out); b2: (1, out).
    Weights are stored (in, out), i.e. the transpose of torch's (out, in).
    """
    batch, d_in = x.shape
    hidden = w1.shape[1]
    out_dim = w2.shape[1]
    out_dtype = jnp.float32

    # Stream the large operands in bf16 (MXU-native); biases and accumulation stay f32.
    # TODO(synk): have the upstream producer emit bf16 x directly so this cast fuses away.
    xs = x.astype(stream_dtype)
    w1s = w1.astype(stream_dtype)
    w2s = w2.astype(stream_dtype)
    b1f = b1.astype(jnp.float32)
    b2f = b2.astype(jnp.float32)

    x_itemsize = jnp.dtype(stream_dtype).itemsize
    out_itemsize = jnp.dtype(out_dtype).itemsize
    tb, vmem_limit = _pick_tile(batch, x_itemsize, out_itemsize, block_batch)
    grid = (pl.cdiv(batch, tb),)

    flops = 2 * batch * (d_in * hidden + hidden * out_dim)
    bytes_accessed = (batch * d_in * x_itemsize          # read x
                      + batch * out_dim * out_itemsize   # write out
                      + (d_in * hidden + hidden) * 4     # w1 + b1
                      + (hidden * out_dim + out_dim) * 4)  # w2 + b2

    return pl.pallas_call(
        mlp_kernel,
        out_shape=jax.ShapeDtypeStruct((batch, out_dim), out_dtype),
        grid=grid,
        in_specs=[
            # x: batch-tiled, pipelined across the grid (ragged tail clipped by Pallas).
            pl.BlockSpec((tb, d_in), lambda i: (i, 0)),
            # weights/biases: constant block index -> stay VMEM-resident (no re-DMA).
            pl.BlockSpec((d_in, hidden), lambda i: (0, 0)),
            pl.BlockSpec((1, hidden), lambda i: (0, 0)),
            pl.BlockSpec((hidden, out_dim), lambda i: (0, 0)),
            pl.BlockSpec((1, out_dim), lambda i: (0, 0)),
        ],
        out_specs=pl.BlockSpec((tb, out_dim), lambda i: (i, 0)),
        compiler_params=pltpu.CompilerParams(
            dimension_semantics=("parallel",),   # megacore on v7x, no-op on v5e/v6e
            vmem_limit_bytes=vmem_limit,         # derived from tb & dtype, per-gen cap
        ),
        cost_estimate=pl.CostEstimate(flops=flops,
                                      bytes_accessed=bytes_accessed,
                                      transcendentals=0),
    )(xs, w1s, b1f, w2s, b2f)


def init_params(key, inputs_dim=10, hidden=10, out=5):
    # Deterministic synthetic init (uniform, ~torch Linear's 1/sqrt(fan_in) bound).
    k1, k2, k3, k4 = jax.random.split(key, 4)
    bound1 = 1.0 / jnp.sqrt(inputs_dim)
    bound2 = 1.0 / jnp.sqrt(hidden)
    # stored as (in, out) = transpose of torch's (out, in) layout
    w1 = jax.random.uniform(k1, (inputs_dim, hidden), jnp.float32, -bound1, bound1)
    b1 = jax.random.uniform(k2, (1, hidden), jnp.float32, -bound1, bound1)
    w2 = jax.random.uniform(k3, (hidden, out), jnp.float32, -bound2, bound2)
    b2 = jax.random.uniform(k4, (1, out), jnp.float32, -bound2, bound2)
    return w1, b1, w2, b2


if __name__ == "__main__":
    key = jax.random.PRNGKey(0)
    kx, kp = jax.random.split(key)

    # Small deterministic example; block_batch=64 exercises multiple grid steps plus
    # the clipped ragged tail (200 rows -> 4 blocks of 64, last block 8 valid rows).
    batch, inputs_dim = 200, 10
    x = jax.random.normal(kx, (batch, inputs_dim), dtype=jnp.float32)
    w1, b1, w2, b2 = init_params(kp, inputs_dim=inputs_dim)

    out = toy_model_forward(x, w1, b1, w2, b2, block_batch=64)
    out = jax.block_until_ready(out)

    # Sanity check vs a plain-JAX reference using the same bf16-rounded operands
    # (the kernel intentionally streams x/w1/w2 in bf16 with f32 accumulation).
    xb = x.astype(jnp.bfloat16).astype(jnp.float32)
    w1b = w1.astype(jnp.bfloat16).astype(jnp.float32)
    w2b = w2.astype(jnp.bfloat16).astype(jnp.float32)
    h_ref = jnp.maximum(xb @ w1b + b1, 0.0)
    ref = h_ref.astype(jnp.bfloat16).astype(jnp.float32) @ w2b + b2

    assert out.shape == (batch, 5)
    assert jnp.allclose(out, ref, atol=1e-2, rtol=1e-2), \
        float(jnp.max(jnp.abs(out - ref)))

    print("KERNEL_OK")
</pallas_src>

<mosaic_0001>
module attributes {stable_mosaic.version = 11 : i64} {
  func.func @mlp_kernel(%arg0: i32, %arg1: memref<64x10xbf16, #tpu.memory_space<vmem>>, %arg2: memref<10x10xbf16, #tpu.memory_space<vmem>>, %arg3: memref<1x10xf32, #tpu.memory_space<vmem>>, %arg4: memref<10x5xbf16, #tpu.memory_space<vmem>>, %arg5: memref<1x5xf32, #tpu.memory_space<vmem>>, %arg6: memref<64x5xf32, #tpu.memory_space<vmem>>) attributes {dimension_semantics = [#tpu.dimension_semantics<parallel>], iteration_bounds = array<i64: 4>, scalar_prefetch = 0 : i64, scratch_operands = 0 : i64, tpu.core_type = #tpu.core_type<tc>, window_params = [{transform_indices = @transform_0, window_bounds = array<i64: 64, 10>}, {pipeline_mode = #tpu.pipeline_mode<synchronous>, transform_indices = @transform_1, window_bounds = array<i64: 10, 10>}, {pipeline_mode = #tpu.pipeline_mode<synchronous>, transform_indices = @transform_2, window_bounds = array<i64: 1, 10>}, {pipeline_mode = #tpu.pipeline_mode<synchronous>, transform_indices = @transform_3, window_bounds = array<i64: 10, 5>}, {pipeline_mode = #tpu.pipeline_mode<synchronous>, transform_indices = @transform_4, window_bounds = array<i64: 1, 5>}, {transform_indices = @transform_5, window_bounds = array<i64: 64, 5>}]} {
    %c0 = arith.constant 0 : index
    %c0_0 = arith.constant 0 : index
    %0 = vector.load %arg1[%c0, %c0_0] : memref<64x10xbf16, #tpu.memory_space<vmem>>, vector<64x10xbf16>
    %c0_1 = arith.constant 0 : index
    %c0_2 = arith.constant 0 : index
    %1 = vector.load %arg2[%c0_1, %c0_2] : memref<10x10xbf16, #tpu.memory_space<vmem>>, vector<10x10xbf16>
    %cst = arith.constant dense<0.000000e+00> : vector<64x10xf32>
    %2 = tpu.matmul %0, %1, %cst {dimension_numbers = #tpu.dot_dimension_numbers<[1], [0], [0], [1], [0, 0, 1, 1], [], []>} : vector<64x10xbf16>, vector<10x10xbf16>, vector<64x10xf32> -> vector<64x10xf32>
    %c0_3 = arith.constant 0 : index
    %c0_4 = arith.constant 0 : index
    %3 = vector.load %arg3[%c0_3, %c0_4] : memref<1x10xf32, #tpu.memory_space<vmem>>, vector<1x10xf32>
    %4 = vector.broadcast %3 : vector<1x10xf32> to vector<64x10xf32>
    %5 = arith.addf %2, %4 : vector<64x10xf32>
    %cst_5 = arith.constant 0.000000e+00 : f32
    %6 = vector.broadcast %cst_5 : f32 to vector<64x10xf32>
    %7 = arith.maximumf %5, %6 : vector<64x10xf32>
    %8 = arith.truncf %7 : vector<64x10xf32> to vector<64x10xbf16>
    %c0_6 = arith.constant 0 : index
    %c0_7 = arith.constant 0 : index
    %9 = vector.load %arg4[%c0_6, %c0_7] : memref<10x5xbf16, #tpu.memory_space<vmem>>, vector<10x5xbf16>
    %cst_8 = arith.constant dense<0.000000e+00> : vector<64x5xf32>
    %10 = tpu.matmul %8, %9, %cst_8 {dimension_numbers = #tpu.dot_dimension_numbers<[1], [0], [0], [1], [0, 0, 1, 1], [], []>} : vector<64x10xbf16>, vector<10x5xbf16>, vector<64x5xf32> -> vector<64x5xf32>
    %c0_9 = arith.constant 0 : index
    %c0_10 = arith.constant 0 : index
    %11 = vector.load %arg5[%c0_9, %c0_10] : memref<1x5xf32, #tpu.memory_space<vmem>>, vector<1x5xf32>
    %12 = vector.broadcast %11 : vector<1x5xf32> to vector<64x5xf32>
    %13 = arith.addf %10, %12 : vector<64x5xf32>
    %c0_11 = arith.constant 0 : index
    %c0_12 = arith.constant 0 : index
    %14 = vector.load %arg6[%c0_11, %c0_12] : memref<64x5xf32, #tpu.memory_space<vmem>>, vector<64x5xf32>
    tpu.vector_store %arg6[%c0_11, %c0_12], %13 {strides = array<i32>} : memref<64x5xf32, #tpu.memory_space<vmem>>, vector<64x5xf32>,
    return
  }
  func.func @transform_0(%arg0: i32) -> (i32, i32) {
    %c0_i32 = arith.constant 0 : i32
    %c0_i32_0 = arith.constant 0 : i32
    return %arg0, %c0_i32 : i32, i32
  }
  func.func @transform_1(%arg0: i32) -> (i32, i32) {
    %c0_i32 = arith.constant 0 : i32
    %c0_i32_0 = arith.constant 0 : i32
    %c0_i32_1 = arith.constant 0 : i32
    return %c0_i32, %c0_i32_0 : i32, i32
  }
  func.func @transform_2(%arg0: i32) -> (i32, i32) {
    %c0_i32 = arith.constant 0 : i32
    %c0_i32_0 = arith.constant 0 : i32
    %c0_i32_1 = arith.constant 0 : i32
    return %c0_i32, %c0_i32_0 : i32, i32
  }
  func.func @transform_3(%arg0: i32) -> (i32, i32) {
    %c0_i32 = arith.constant 0 : i32
    %c0_i32_0 = arith.constant 0 : i32
    %c0_i32_1 = arith.constant 0 : i32
    return %c0_i32, %c0_i32_0 : i32, i32
  }
  func.func @transform_4(%arg0: i32) -> (i32, i32) {
    %c0_i32 = arith.constant 0 : i32
    %c0_i32_0 = arith.constant 0 : i32
    %c0_i32_1 = arith.constant 0 : i32
    return %c0_i32, %c0_i32_0 : i32, i32
  }
  func.func @transform_5(%arg0: i32) -> (i32, i32) {
    %c0_i32 = arith.constant 0 : i32
    %c0_i32_0 = arith.constant 0 : i32
    return %arg0, %c0_i32 : i32, i32
  }
}

</mosaic_0001>

<llo_original>
// kernel: tpu_custom_call.1
$region0: #{tpu_custom_call.1}
  #allocation0 [shape = 'u32[]', space=smem, size = 0x4, offset = 0x4, fixed_abs, tag = 'smem constant byte address 0x4 - core index']
  #allocation1 [shape = 'u32[72,128]{1,0:T(1,128)}', space=vmem, size = 0x9000, scoped, tag = 'internal scratch']
  %s0 = inlined_call_operand.vmem [shape: bf16[200,10], index: 0, kind: input, shape index: {}]
  %s1 = inlined_call_operand.vmem [shape: bf16[10,10], index: 1, kind: input, shape index: {}]
  %s2 = inlined_call_operand.vmem [shape: f32[1,10], index: 2, kind: input, shape index: {}]
  %s3 = inlined_call_operand.vmem [shape: bf16[10,5], index: 3, kind: input, shape index: {}]
  %s4 = inlined_call_operand.vmem [shape: f32[1,5], index: 4, kind: input, shape index: {}]
  %s5 = inlined_call_operand.vmem [shape: f32[200,5], index: 5, kind: output, shape index: {}]
  %s6 = sld [smem:[#allocation0]]
  $region101: #{tpu_custom_call.1} parent=0
    _
  %s8 = ssub.s32 1, %s6
  %s9 = scalar_select 0, %s8, %s6
  $region1: #{tpu_custom_call.1} parent=0
    #allocation2 [shape = 'u8[65536]{0}', space=vmem, size = 0x10000, scoped, tag = 'output window, operand 0']
    loop: start=0, step=1, limit=6
    $region2: #{tpu_custom_call.1} parent=1 // loop_pre_header
      _
    $region3: #{tpu_custom_call.1} parent=1 // loop_header
      %s11 = sphi 0, %s15
      %p12 = scmp.ge.s32.totalorder %s11, 6
      %s21 = sphi 0, %s23
      %s24 = sphi 0, %s21
      %s25 = sphi 0, %s24
      %s41 = sphi 0, %s25
      %s45 = sphi 0, %s45
      %s47 = sphi 0, %s45
      %s48 = sphi 0, %s47
      %s62 = sphi 0, %s48
      %s66 = sphi 0, %s66
      %s68 = sphi 0, %s66
      %s69 = sphi 0, %s68
      %s83 = sphi 0, %s69
      %s87 = sphi 0, %s87
      %s89 = sphi 0, %s87
      %s90 = sphi 0, %s89
      %s104 = sphi 0, %s90
      %s108 = sphi 0, %s108
      %s110 = sphi 0, %s108
      %s111 = sphi 0, %s110
      %s125 = sphi 0, %s111
      %s131 = sphi 0, %s133
      %s134 = sphi 0, %s131
      %s135 = sphi 0, %s134
      %s151 = sphi 0, %s135
    $region4: #{tpu_custom_call.1} parent=1 // loop_header_branch
      %14 = sbr.rel (%p12) target = $region8
    $region5: #{tpu_custom_call.1} parent=1 // loop_body
      %s16 = ssub.s32 %s11, 1
      %s17 = ssub.s32 %s11, 2
      %s18 = sadd.s32 %s11, 1
      %s19 = ssub.s32 %s11, %s18
      %p20 = scmp.eq.s32.totalorder %s19, 0
      %s22 = sadd.s32 %s21, 1
      %s23 = scalar_select %p20, %s21, %s22
      %p26 = pneg %p20
      %p27 = scmp.eq.s32.totalorder %s11, 3
      %p28 = por %p26, %p27
      %p29 = scmp.ne.s32.totalorder %s21, %s24
      %p30 = scmp.eq.s32.totalorder %s11, 0
      %p31 = por %p29, %p30
      %p32 = scmp.ne.s32.totalorder %s21, %s24
      %p33 = scmp.eq.s32.totalorder %s16, 3
      %p34 = por %p32, %p33
      %p35 = scmp.ne.s32.totalorder %s24, %s25
      %p36 = scmp.eq.s32.totalorder %s16, 0
      %p37 = por %p35, %p36
      %p38 = scmp.ne.s32.totalorder %s24, %s25
      %p39 = scmp.eq.s32.totalorder %s17, 3
      %p40 = por %p38, %p39
      %p42 = scmp.ne.s32.totalorder %s25, %s41
      %p43 = scmp.eq.s32.totalorder %s17, 0
      %p44 = por %p42, %p43
      %s46 = sadd.s32 %s45, 1
      %p49 = scmp.eq.s32.totalorder %s11, 3
      %p50 = scmp.ne.s32.totalorder %s45, %s47
      %p51 = scmp.eq.s32.totalorder %s11, 0
      %p52 = por %p50, %p51
      %p53 = scmp.ne.s32.totalorder %s45, %s47
      %p54 = scmp.eq.s32.totalorder %s16, 3
      %p55 = por %p53, %p54
      %p56 = scmp.ne.s32.totalorder %s47, %s48
      %p57 = scmp.eq.s32.totalorder %s16, 0
      %p58 = por %p56, %p57
      %p59 = scmp.ne.s32.totalorder %s47, %s48
      %p60 = scmp.eq.s32.totalorder %s17, 3
      %p61 = por %p59, %p60
      %p63 = scmp.ne.s32.totalorder %s48, %s62
      %p64 = scmp.eq.s32.totalorder %s17, 0
      %p65 = por %p63, %p64
      %s67 = sadd.s32 %s66, 1
      %p70 = scmp.eq.s32.totalorder %s11, 3
      %p71 = scmp.ne.s32.totalorder %s66, %s68
      %p72 = scmp.eq.s32.totalorder %s11, 0
      %p73 = por %p71, %p72
      %p74 = scmp.ne.s32.totalorder %s66, %s68
      %p75 = scmp.eq.s32.totalorder %s16, 3
      %p76 = por %p74, %p75
      %p77 = scmp.ne.s32.totalorder %s68, %s69
      %p78 = scmp.eq.s32.totalorder %s16, 0
      %p79 = por %p77, %p78
      %p80 = scmp.ne.s32.totalorder %s68, %s69
      %p81 = scmp.eq.s32.totalorder %s17, 3
      %p82 = por %p80, %p81
      %p84 = scmp.ne.s32.totalorder %s69, %s83
      %p85 = scmp.eq.s32.totalorder %s17, 0
      %p86 = por %p84, %p85
      %s88 = sadd.s32 %s87, 1
      %p91 = scmp.eq.s32.totalorder %s11, 3
      %p92 = scmp.ne.s32.totalorder %s87, %s89
      %p93 = scmp.eq.s32.totalorder %s11, 0
      %p94 = por %p92, %p93
      %p95 = scmp.ne.s32.totalorder %s87, %s89
      %p96 = scmp.eq.s32.totalorder %s16, 3
      %p97 = por %p95, %p96
      %p98 = scmp.ne.s32.totalorder %s89, %s90
      %p99 = scmp.eq.s32.totalorder %s16, 0
      %p100 = por %p98, %p99
      %p101 = scmp.ne.s32.totalorder %s89, %s90
      %p102 = scmp.eq.s32.totalorder %s17, 3
      %p103 = por %p101, %p102
      %p105 = scmp.ne.s32.totalorder %s90, %s104
      %p106 = scmp.eq.s32.totalorder %s17, 0
      %p107 = por %p105, %p106
      %s109 = sadd.s32 %s108, 1
      %p112 = scmp.eq.s32.totalorder %s11, 3
      %p113 = scmp.ne.s32.totalorder %s108, %s110
      %p114 = scmp.eq.s32.totalorder %s11, 0
      %p115 = por %p113, %p114
      %p116 = scmp.ne.s32.totalorder %s108, %s110
      %p117 = scmp.eq.s32.totalorder %s16, 3
      %p118 = por %p116, %p117
      %p119 = scmp.ne.s32.totalorder %s110, %s111
      %p120 = scmp.eq.s32.totalorder %s16, 0
      %p121 = por %p119, %p120
      %p122 = scmp.ne.s32.totalorder %s110, %s111
      %p123 = scmp.eq.s32.totalorder %s17, 3
      %p124 = por %p122, %p123
      %p126 = scmp.ne.s32.totalorder %s111, %s125
      %p127 = scmp.eq.s32.totalorder %s17, 0
      %p128 = por %p126, %p127
      %s129 = ssub.s32 %s11, %s18
      %p130 = scmp.eq.s32.totalorder %s129, 0
      %s132 = sadd.s32 %s131, 1
      %s133 = scalar_select %p130, %s131, %s132
      %p136 = pneg %p130
      %p137 = scmp.eq.s32.totalorder %s11, 3
      %p138 = por %p136, %p137
      %p139 = scmp.ne.s32.totalorder %s131, %s134
      %p140 = scmp.eq.s32.totalorder %s11, 0
      %p141 = por %p139, %p140
      %p142 = scmp.ne.s32.totalorder %s131, %s134
      %p143 = scmp.eq.s32.totalorder %s16, 3
      %p144 = por %p142, %p143
      %p145 = scmp.ne.s32.totalorder %s134, %s135
      %p146 = scmp.eq.s32.totalorder %s16, 0
      %p147 = por %p145, %p146
      %p148 = scmp.ne.s32.totalorder %s134, %s135
      %p149 = scmp.eq.s32.totalorder %s17, 3
      %p150 = por %p148, %p149
      %p152 = scmp.ne.s32.totalorder %s135, %s151
      %p153 = scmp.eq.s32.totalorder %s17, 0
      %p154 = por %p152, %p153
      %p155 = scmp.le.s32.totalorder 1, %s11
      %p156 = scmp.lt.s32.totalorder %s11, 5
      %p157 = pnand %p155, %p156
      %p158 = pneg %p157
      // Predicated region
      $region9: #{tpu_custom_call.1} parent=5 // pred_check
        _
      $region10: #{tpu_custom_call.1} parent=5 // pred_check_branch
        %160 = sbr.rel (%p157) target = $region12
      $region11: #{tpu_custom_call.1} parent=5 // pred_region
        %s161 = ssub.s32 %s11, 1
        // Predicated region
        $region13: #{tpu_custom_call.1} parent=11 // pred_check
          %p162 = pneg %p58
        $region14: #{tpu_custom_call.1} parent=11 // pred_check_branch
          %164 = sbr.rel (%p162) target = $region16
        $region15: #{tpu_custom_call.1} parent=11 // pred_region
          _
        $region16: #{tpu_custom_call.1} parent=11 // pred_fallthru
          _
        // Predicated region
        $region17: #{tpu_custom_call.1} parent=11 // pred_check
          %p165 = pneg %p79
        $region18: #{tpu_custom_call.1} parent=11 // pred_check_branch
          %167 = sbr.rel (%p165) target = $region20
        $region19: #{tpu_custom_call.1} parent=11 // pred_region
          _
        $region20: #{tpu_custom_call.1} parent=11 // pred_fallthru
          _
        // Predicated region
        $region21: #{tpu_custom_call.1} parent=11 // pred_check
          %p168 = pneg %p100
        $region22: #{tpu_custom_call.1} parent=11 // pred_check_branch
          %170 = sbr.rel (%p168) target = $region24
        $region23: #{tpu_custom_call.1} parent=11 // pred_region
          _
        $region24: #{tpu_custom_call.1} parent=11 // pred_fallthru
          _
        // Predicated region
        $region25: #{tpu_custom_call.1} parent=11 // pred_check
          %p171 = pneg %p121
        $region26: #{tpu_custom_call.1} parent=11 // pred_check_branch
          %173 = sbr.rel (%p171) target = $region28
        $region27: #{tpu_custom_call.1} parent=11 // pred_region
          _
        $region28: #{tpu_custom_call.1} parent=11 // pred_fallthru
          _
      $region12: #{tpu_custom_call.1} parent=5 // pred_fallthru
        _
      %p174 = scmp.lt.s32.totalorder %s11, 4
      // Predicated region
      $region29: #{tpu_custom_call.1} parent=5 // pred_check
        %p175 = pneg %p174
      $region30: #{tpu_custom_call.1} parent=5 // pred_check_branch
        %177 = sbr.rel (%p175) target = $region32
      $region31: #{tpu_custom_call.1} parent=5 // pred_region
        // Predicated region
        $region33: #{tpu_custom_call.1} parent=31 // pred_check
          %p178 = pneg %p31
        $region34: #{tpu_custom_call.1} parent=31 // pred_check_branch
          %180 = sbr.rel (%p178) target = $region36
        $region35: #{tpu_custom_call.1} parent=31 // pred_region
          %s181 = smul.u32 8, %s11
          %s182 = ssub.s32 25, %s181
          %p183 = scmp.lt.s32.totalorder %s182, 8
          %s184 = scalar_select %p183, %s182, 8
          %s185 = smul.u32 4, %s184
          %p186 = scmp.lt.s32.totalorder %s181, 24
          %s187 = scalar_select %p186, %s181, 24
          %s188 = smul.addr %s187, 4
          %s189 = scalar_lea.vmem %s0, %s188
          %s190 = smul.u32 8, %s11
          %s191 = ssub.s32 25, %s190
          %p192 = scmp.lt.s32.totalorder %s191, 8
          %s193 = scalar_select %p192, %s191, 8
          %s194 = smul.u32 4, %s193
        $region36: #{tpu_custom_call.1} parent=31 // pred_fallthru
          _
      $region32: #{tpu_custom_call.1} parent=5 // pred_fallthru
        _
      %p195 = scmp.le.s32.totalorder 1, %s11
      %p196 = scmp.lt.s32.totalorder %s11, 5
      %p197 = pnand %p195, %p196
      %p198 = pneg %p197
      // Predicated region
      $region37: #{tpu_custom_call.1} parent=5 // pred_check
        _
      $region38: #{tpu_custom_call.1} parent=5 // pred_check_branch
        %200 = sbr.rel (%p197) target = $region40
      $region39: #{tpu_custom_call.1} parent=5 // pred_region
        %s201 = ssub.s32 %s11, 1
        %s202 = smul.u32 8, %s16
        %s203 = ssub.s32 25, %s202
        %p204 = scmp.lt.s32.totalorder %s203, 8
        %s205 = scalar_select %p204, %s203, 8
        %s206 = smul.u32 4, %s205
        %p207 = scmp.lt.s32.totalorder %s202, 24
        %s208 = scalar_select %p207, %s202, 24
        %s209 = smul.addr %s208, 4
        %s210 = scalar_lea.vmem %s0, %s209
        %p211 = pneg %p37
        %p212 = pneg %p34
        %p213 = pneg %p58
        %p214 = pneg %p55
        %p215 = pneg %p79
        %p216 = pneg %p76
        %p217 = pneg %p100
        %p218 = pneg %p97
        %p219 = pneg %p121
        %p220 = pneg %p118
        %p221 = pneg %p147
        %p222 = pneg %p144
        %s223 = sand.u32 %s134, 1
        %s224 = sand.u32 %s134, 1
        %s225 = smul.addr %s224, 64
        %s226 = scalar_lea.vmem [#allocation2], %s225
        %s227 = smul.u32 8, %s16
        %s228 = ssub.s32 25, %s227
        %p229 = scmp.lt.s32.totalorder %s228, 8
        %s230 = scalar_select %p229, %s228, 8
        %s231 = smul.u32 4, %s230
        %p232 = scmp.lt.s32.totalorder %s227, 24
        %s233 = scalar_select %p232, %s227, 24
        %s234 = smul.addr %s233, 4
        %s235 = scalar_lea.vmem %s0, %s234
        %s236 = smul.u32 8, %s16
        %s237 = ssub.s32 25, %s236
        %p238 = scmp.lt.s32.totalorder %s237, 8
        %s239 = scalar_select %p238, %s237, 8
        %s240 = smul.u32 4, %s239
        %s241 = smul.u32 8, %s16
        %s242 = ssub.s32 25, %s241
        %p243 = scmp.lt.s32.totalorder %s242, 8
        %s244 = scalar_select %p243, %s242, 8
        %s245 = smul.u32 8, %s244
        %v247 = vld [vmem:[%s235] sm:$0xf]
        %v248 = vld [vmem:[%s235 + $0x4] sm:$0xf]
        %v249 = vld [vmem:[%s235 + $0x8] sm:$0xf]
        %v250 = vld [vmem:[%s235 + $0xc] sm:$0xf]
        %v251 = vld [vmem:[%s235 + $0x10] sm:$0xf]
        %v252 = vld [vmem:[%s235 + $0x14] sm:$0xf]
        %v253 = vld [vmem:[%s235 + $0x18] sm:$0xf]
        %v254 = vld [vmem:[%s235 + $0x1c] sm:$0xf]
        %v255 = vld [vmem:[%s1] sm:$0xf]
        %v256 = vld [vmem:[%s1 + $0x4] sm:$0x1]
        %v257 = vld [vmem:[%s2] sm:$0x1]
        %v259 = vperm.slane %v257, 0
        %v269 = vunpack.c.l.b16 %v247
        %v270 = vunpack.c.l.b16 %v248
        %v271 = vunpack.c.l.b16 %v249
        %v272 = vunpack.c.l.b16 %v250
        %v273 = vunpack.c.l.b16 %v251
        %v274 = vunpack.c.l.b16 %v252
        %v275 = vunpack.c.l.b16 %v253
        %v276 = vunpack.c.l.b16 %v254
        %v277 = vpack.c.b16 %v270, %v269
        %v278 = vpack.c.b16 %v272, %v271
        %v279 = vpack.c.b16 %v274, %v273
        %v280 = vpack.c.b16 %v276, %v275
        %v283 = vunpack.c.l.b16 %v255
        %v284 = vunpack.c.l.b16 %v256
        %v285 = vpack.c.b16 %v284, %v283
        %vm286 = vcmask 80896
        %v288 = vsel %vm286, %v277, 0
        %v291 = vsel %vm286, %v278, 0
        %v294 = vsel %vm286, %v279, 0
        %v297 = vsel %vm286, %v280, 0
        %vm299 = vcmask 1044480
        %v301 = vsel %vm299, %v285, 0
        %303 = vmatpush.bf16.msra.mxu0 0
        %304 = vmatpush.bf16.msra.mxu0 0
        %305 = vmatpush.bf16.msra.mxu0 0
        %306 = vmatpush.bf16.msra.mxu0 0
        %307 = vmatpush.bf16.msra.mxu0 0
        %308 = vmatpush.bf16.msra.mxu0 0
        %309 = vmatpush.bf16.msra.mxu0 0
        %310 = vmatpush.bf16.msra.mxu0 %v301
        %311 = vmatmul.bf16.gmra.mxu0 %v288
        %v312 = vpop.f32.mrf.mxu0
        %v313 = vadd.f32 %v259, %v312
        %v314 = vpop.f32.mrf.mxu0
        %v315 = vadd.f32 %v259, %v314
        %316 = vmatmul.bf16.gmra.mxu0 %v291
        %v317 = vpop.f32.mrf.mxu0
        %v318 = vadd.f32 %v259, %v317
        %v319 = vpop.f32.mrf.mxu0
        %v320 = vadd.f32 %v259, %v319
        %321 = vmatmul.bf16.gmra.mxu0 %v294
        %v322 = vpop.f32.mrf.mxu0
        %v323 = vadd.f32 %v259, %v322
        %v324 = vpop.f32.mrf.mxu0
        %v325 = vadd.f32 %v259, %v324
        %326 = vmatmul.bf16.gmra.mxu0 %v297
        %v327 = vpop.f32.mrf.mxu0
        %v328 = vadd.f32 %v259, %v327
        %v329 = vpop.f32.mrf.mxu0
        %v330 = vadd.f32 %v259, %v329
        %331 = vdwg.mxu0
        %v332 = vmax.f32 %v313, 0.0
        %v333 = vmax.f32 %v315, 0.0
        %v334 = vmax.f32 %v318, 0.0
        %v335 = vmax.f32 %v320, 0.0
        %v336 = vmax.f32 %v323, 0.0
        %v337 = vmax.f32 %v325, 0.0
        %v338 = vmax.f32 %v328, 0.0
        %v339 = vmax.f32 %v330, 0.0
        %v340 = vpack.c.bf16 %v333, %v332
        %v341 = vpack.c.bf16 %v335, %v334
        %v342 = vpack.c.bf16 %v337, %v336
        %v343 = vpack.c.bf16 %v339, %v338
        %v344 = vld [vmem:[%s3] sm:$0xf]
        %v345 = vld [vmem:[%s3 + $0x4] sm:$0x1]
        %v346 = vld [vmem:[%s4] sm:$0x1]
        %v348 = vperm.slane %v346, 0
        %v352 = vunpack.c.l.b16 %v344
        %v353 = vunpack.c.l.b16 %v345
        %v354 = vpack.c.b16 %v353, %v352
        %v356 = vsel %vm286, %v340, 0
        %v359 = vsel %vm286, %v341, 0
        %v362 = vsel %vm286, %v342, 0
        %v365 = vsel %vm286, %v343, 0
        %v368 = vsel %vm299, %v354, 0
        %370 = vmatpush.bf16.msra.mxu0 0
        %371 = vmatpush.bf16.msra.mxu0 0
        %372 = vmatpush.bf16.msra.mxu0 0
        %373 = vmatpush.bf16.msra.mxu0 0
        %374 = vmatpush.bf16.msra.mxu0 0
        %375 = vmatpush.bf16.msra.mxu0 0
        %376 = vmatpush.bf16.msra.mxu0 0
        %377 = vmatpush.bf16.msra.mxu0 %v368
        %378 = vmatmul.bf16.gmra.mxu0 %v356
        %v379 = vpop.f32.mrf.mxu0
        %v380 = vadd.f32 %v348, %v379
        %v381 = vpop.f32.mrf.mxu0
        %v382 = vadd.f32 %v348, %v381
        %383 = vmatmul.bf16.gmra.mxu0 %v359
        %v384 = vpop.f32.mrf.mxu0
        %v385 = vadd.f32 %v348, %v384
        %v386 = vpop.f32.mrf.mxu0
        %v387 = vadd.f32 %v348, %v386
        %388 = vmatmul.bf16.gmra.mxu0 %v362
        %v389 = vpop.f32.mrf.mxu0
        %v390 = vadd.f32 %v348, %v389
        %v391 = vpop.f32.mrf.mxu0
        %v392 = vadd.f32 %v348, %v391
        %393 = vmatmul.bf16.gmra.mxu0 %v365
        %v394 = vpop.f32.mrf.mxu0
        %v395 = vadd.f32 %v348, %v394
        %v396 = vpop.f32.mrf.mxu0
        %v397 = vadd.f32 %v348, %v396
        %398 = vdwg.mxu0
        %vm399 = vcmask 39936
        %400 = vst.msk [vmem:[%s226] sm:$0xff] %vm399, %v380
        %401 = vst.msk [vmem:[%s226 + $0x8] sm:$0xff] %vm399, %v382
        %402 = vst.msk [vmem:[%s226 + $0x10] sm:$0xff] %vm399, %v385
        %403 = vst.msk [vmem:[%s226 + $0x18] sm:$0xff] %vm399, %v387
        %404 = vst.msk [vmem:[%s226 + $0x20] sm:$0xff] %vm399, %v390
        %405 = vst.msk [vmem:[%s226 + $0x28] sm:$0xff] %vm399, %v392
        %406 = vst.msk [vmem:[%s226 + $0x30] sm:$0xff] %vm399, %v395
        %407 = vst.msk [vmem:[%s226 + $0x38] sm:$0xff] %vm399, %v397
        %s408 = sand.u32 %s134, 1
        %s409 = sand.u32 %s134, 1
        %s410 = smul.addr %s409, 64
        %s411 = scalar_lea.vmem [#allocation2], %s410
        // Predicated region
        $region41: #{tpu_custom_call.1} parent=39 // pred_check
          %p412 = pneg %p144
        $region42: #{tpu_custom_call.1} parent=39 // pred_check_branch
          %414 = sbr.rel (%p412) target = $region44
        $region43: #{tpu_custom_call.1} parent=39 // pred_region
          %s415 = smul.u32 8, %s16
          %s416 = ssub.s32 25, %s415
          %p417 = scmp.lt.s32.totalorder %s416, 8
          %s418 = scalar_select %p417, %s416, 8
          %s419 = smul.u32 8, %s418
          %p420 = scmp.ne.s32.totalorder 0, %s419
          %s421 = smul.addr %s415, 8
          %s422 = scalar_lea.vmem %s5, %s421
          // Predicated region
          $region45: #{tpu_custom_call.1} parent=43 // pred_check
            %p423 = pneg %p420
          $region46: #{tpu_custom_call.1} parent=43 // pred_check_branch
            %425 = sbr.rel (%p423) target = $region48
          $region47: #{tpu_custom_call.1} parent=43 // pred_region
            // Predicated region
            $region49: #{tpu_custom_call.1} parent=47 // pred_check
              _
            $region50: #{tpu_custom_call.1} parent=47 // pred_check_branch
              %427 = sbr.rel (0) target = $region52
            $region51: #{tpu_custom_call.1} parent=47 // pred_region
              // Predicated region
              $region71: #{tpu_custom_call.1} parent=51 // pred_check
                _
              $region72: #{tpu_custom_call.1} parent=51 // pred_check_branch
                %491 = sbr.rel (0) target = $region74
              $region73: #{tpu_custom_call.1} parent=51 // pred_region
                %s492 = sshrl.u32 %s418, 3
                // While loop
                $region75: #{tpu_custom_call.1} parent=73 // loop_pre_header
                  _
                $region76: #{tpu_custom_call.1} parent=73 // loop_header
                  %s494 = sphi 0, %s496
                  %p495 = scmp.ge.s32.totalorder %s494, %s492
                  %s499 = sphi 0, %s520
                  %s500 = sphi %s411, %s523
                  %s501 = sphi %s422, %s524
                $region77: #{tpu_custom_call.1} parent=73 // loop_header_branch
                  %498 = sbr.rel (%p495) target = $region81
                $region78: #{tpu_custom_call.1} parent=73 // loop_body
                  %v502 = vld [vmem:[%s500] sm:$0xff]
                  %503 = vst [vmem:[%s501] sm:$0xff] %v502
                  %v504 = vld [vmem:[%s500 + $0x8] sm:$0xff]
                  %505 = vst [vmem:[%s501 + $0x8] sm:$0xff] %v504
                  %v506 = vld [vmem:[%s500 + $0x10] sm:$0xff]
                  %507 = vst [vmem:[%s501 + $0x10] sm:$0xff] %v506
                  %v508 = vld [vmem:[%s500 + $0x18] sm:$0xff]
                  %509 = vst [vmem:[%s501 + $0x18] sm:$0xff] %v508
                  %v510 = vld [vmem:[%s500 + $0x20] sm:$0xff]
                  %511 = vst [vmem:[%s501 + $0x20] sm:$0xff] %v510
                  %v512 = vld [vmem:[%s500 + $0x28] sm:$0xff]
                  %513 = vst [vmem:[%s501 + $0x28] sm:$0xff] %v512
                  %v514 = vld [vmem:[%s500 + $0x30] sm:$0xff]
                  %515 = vst [vmem:[%s501 + $0x30] sm:$0xff] %v514
                  %v516 = vld [vmem:[%s500 + $0x38] sm:$0xff]
                  %517 = vst [vmem:[%s501 + $0x38] sm:$0xff] %v516
                  %s518 = sadd.s32 1, %s499
                  %p519 = scmp.ge.s32.totalorder %s518, %s492
                  %s520 = scalar_select %p519, 0, %s518
                  %s521 = smul.u32 %s520, 64
                  %s522 = smul.u32 %s520, 64
                  %s523 = scalar_lea.vmem %s411, %s521 [#allocation2]
                  %s524 = scalar_lea.vmem %s422, %s522
                $region79: #{tpu_custom_call.1} parent=73 // loop_footer
                  %s496 = sadd.s32 %s494, 1
                $region80: #{tpu_custom_call.1} parent=73 // loop_footer_branch
                  %493 = sbr.rel target = $region76
                $region81: #{tpu_custom_call.1} parent=73 // loop_exit
                  _
                %s525 = sshrl.u32 %s418, 3
                %s526 = sand.u32 %s418, 7
                %s527 = smul.u32 %s525, 8
                %s528 = smul.u32 8, %s527
                %s529 = scalar_lea.vmem %s411, %s528 [#allocation2]
                %s530 = smul.u32 8, %s527
                %s531 = scalar_lea.vmem %s422, %s530
                // While loop
                $region82: #{tpu_custom_call.1} parent=73 // loop_pre_header
                  _
                $region83: #{tpu_custom_call.1} parent=73 // loop_header
                  %s533 = sphi 0, %s535
                  %p534 = scmp.ge.s32.totalorder %s533, %s526
                  %s538 = sphi 0, %s545
                  %s539 = sphi %s529, %s548
                  %s540 = sphi %s531, %s549
                $region84: #{tpu_custom_call.1} parent=73 // loop_header_branch
                  %537 = sbr.rel (%p534) target = $region88
                $region85: #{tpu_custom_call.1} parent=73 // loop_body
                  %v541 = vld [vmem:[%s539] sm:$0xff]
                  %542 = vst [vmem:[%s540] sm:$0xff] %v541
                  %s543 = sadd.s32 1, %s538
                  %p544 = scmp.ge.s32.totalorder %s543, %s526
                  %s545 = scalar_select %p544, 0, %s543
                  %s546 = smul.u32 %s545, 8
                  %s547 = smul.u32 %s545, 8
                  %s548 = scalar_lea.vmem %s529, %s546 [#allocation2]
                  %s549 = scalar_lea.vmem %s531, %s547
                $region86: #{tpu_custom_call.1} parent=73 // loop_footer
                  %s535 = sadd.s32 %s533, 1
                $region87: #{tpu_custom_call.1} parent=73 // loop_footer_branch
                  %532 = sbr.rel target = $region83
                $region88: #{tpu_custom_call.1} parent=73 // loop_exit
                  _
              $region74: #{tpu_custom_call.1} parent=51 // pred_fallthru
                _
              // Predicated region
              $region89: #{tpu_custom_call.1} parent=51 // pred_check
                _
              $region90: #{tpu_custom_call.1} parent=51 // pred_check_branch
                %551 = sbr.rel target = $region92
              $region91: #{tpu_custom_call.1} parent=51 // pred_region
                _
              $region92: #{tpu_custom_call.1} parent=51 // pred_fallthru
                _
            $region52: #{tpu_custom_call.1} parent=47 // pred_fallthru
              _
            // Predicated region
            $region53: #{tpu_custom_call.1} parent=47 // pred_check
              _
            $region54: #{tpu_custom_call.1} parent=47 // pred_check_branch
              %429 = sbr.rel target = $region56
            $region55: #{tpu_custom_call.1} parent=47 // pred_region
              %s431 = ssub.s32 256, 1
              %s432 = sshrl.u32 %s418, 3
              // While loop
              $region57: #{tpu_custom_call.1} parent=55 // loop_pre_header
                _
              $region58: #{tpu_custom_call.1} parent=55 // loop_header
                %s434 = sphi 0, %s436
                %p435 = scmp.ge.s32.totalorder %s434, %s432
                %s439 = sphi 0, %s460
                %s440 = sphi %s411, %s463
                %s441 = sphi %s422, %s464
              $region59: #{tpu_custom_call.1} parent=55 // loop_header_branch
                %438 = sbr.rel (%p435) target = $region63
              $region60: #{tpu_custom_call.1} parent=55 // loop_body
                %v442 = vld [vmem:[%s440] sm:%s431]
                %443 = vst [vmem:[%s441] sm:%s431] %v442
                %v444 = vld [vmem:[%s440 + $0x8] sm:%s431]
                %445 = vst [vmem:[%s441 + $0x8] sm:%s431] %v444
                %v446 = vld [vmem:[%s440 + $0x10] sm:%s431]
                %447 = vst [vmem:[%s441 + $0x10] sm:%s431] %v446
                %v448 = vld [vmem:[%s440 + $0x18] sm:%s431]
                %449 = vst [vmem:[%s441 + $0x18] sm:%s431] %v448
                %v450 = vld [vmem:[%s440 + $0x20] sm:%s431]
                %451 = vst [vmem:[%s441 + $0x20] sm:%s431] %v450
                %v452 = vld [vmem:[%s440 + $0x28] sm:%s431]
                %453 = vst [vmem:[%s441 + $0x28] sm:%s431] %v452
                %v454 = vld [vmem:[%s440 + $0x30] sm:%s431]
                %455 = vst [vmem:[%s441 + $0x30] sm:%s431] %v454
                %v456 = vld [vmem:[%s440 + $0x38] sm:%s431]
                %457 = vst [vmem:[%s441 + $0x38] sm:%s431] %v456
                %s458 = sadd.s32 1, %s439
                %p459 = scmp.ge.s32.totalorder %s458, %s432
                %s460 = scalar_select %p459, 0, %s458
                %s461 = smul.u32 %s460, 64
                %s462 = smul.u32 %s460, 64
                %s463 = scalar_lea.vmem %s411, %s461 [#allocation2]
                %s464 = scalar_lea.vmem %s422, %s462
              $region61: #{tpu_custom_call.1} parent=55 // loop_footer
                %s436 = sadd.s32 %s434, 1
              $region62: #{tpu_custom_call.1} parent=55 // loop_footer_branch
                %433 = sbr.rel target = $region58
              $region63: #{tpu_custom_call.1} parent=55 // loop_exit
                _
              %s465 = sshrl.u32 %s418, 3
              %s466 = sand.u32 %s418, 7
              %s467 = smul.u32 %s465, 8
              %s468 = smul.u32 8, %s467
              %s469 = scalar_lea.vmem %s411, %s468 [#allocation2]
              %s470 = smul.u32 8, %s467
              %s471 = scalar_lea.vmem %s422, %s470
              // While loop
              $region64: #{tpu_custom_call.1} parent=55 // loop_pre_header
                _
              $region65: #{tpu_custom_call.1} parent=55 // loop_header
                %s473 = sphi 0, %s475
                %p474 = scmp.ge.s32.totalorder %s473, %s466
                %s478 = sphi 0, %s485
                %s479 = sphi %s469, %s488
                %s480 = sphi %s471, %s489
              $region66: #{tpu_custom_call.1} parent=55 // loop_header_branch
                %477 = sbr.rel (%p474) target = $region70
              $region67: #{tpu_custom_call.1} parent=55 // loop_body
                %v481 = vld [vmem:[%s479] sm:%s431]
                %482 = vst [vmem:[%s480] sm:%s431] %v481
                %s483 = sadd.s32 1, %s478
                %p484 = scmp.ge.s32.totalorder %s483, %s466
                %s485 = scalar_select %p484, 0, %s483
                %s486 = smul.u32 %s485, 8
                %s487 = smul.u32 %s485, 8
                %s488 = scalar_lea.vmem %s469, %s486 [#allocation2]
                %s489 = scalar_lea.vmem %s471, %s487
              $region68: #{tpu_custom_call.1} parent=55 // loop_footer
                %s475 = sadd.s32 %s473, 1
              $region69: #{tpu_custom_call.1} parent=55 // loop_footer_branch
                %472 = sbr.rel target = $region65
              $region70: #{tpu_custom_call.1} parent=55 // loop_exit
                _
            $region56: #{tpu_custom_call.1} parent=47 // pred_fallthru
              _
          $region48: #{tpu_custom_call.1} parent=43 // pred_fallthru
            _
          %552 = vnop
        $region44: #{tpu_custom_call.1} parent=39 // pred_fallthru
          _
      $region40: #{tpu_custom_call.1} parent=5 // pred_fallthru
        _
      %p553 = scmp.le.s32.totalorder 2, %s11
      // Predicated region
      $region93: #{tpu_custom_call.1} parent=5 // pred_check
        %p554 = pneg %p553
      $region94: #{tpu_custom_call.1} parent=5 // pred_check_branch
        %556 = sbr.rel (%p554) target = $region96
      $region95: #{tpu_custom_call.1} parent=5 // pred_region
        %s557 = ssub.s32 %s11, 2
        // Predicated region
        $region97: #{tpu_custom_call.1} parent=95 // pred_check
          %p558 = pneg %p150
        $region98: #{tpu_custom_call.1} parent=95 // pred_check_branch
          %560 = sbr.rel (%p558) target = $region100
        $region99: #{tpu_custom_call.1} parent=95 // pred_region
          %s561 = sand.u32 %s135, 1
          %s562 = sand.u32 %s135, 1
          %s563 = smul.addr %s562, 64
          %s564 = scalar_lea.vmem [#allocation2], %s563
        $region100: #{tpu_custom_call.1} parent=95 // pred_fallthru
          _
      $region96: #{tpu_custom_call.1} parent=5 // pred_fallthru
        _
    $region6: #{tpu_custom_call.1} parent=1 // loop_footer
      %s15 = sadd.s32 1, %s11
    $region7: #{tpu_custom_call.1} parent=1 // loop_footer_branch
      %10 = sbr.rel target = $region3
    $region8: #{tpu_custom_call.1} parent=1 // loop_exit
      _

</llo_original>
